<compile_context>
chip_gen: v5e
topology: v5e:2x2
jax: 0.10.0
libtpu: 0.0.40
codegen_flags: <defaults>
</compile_context>

<pallas_src>
import functools

import jax
import jax.numpy as jnp
from jax.experimental import pallas as pl
from jax.experimental.pallas import tpu as pltpu

HIDDEN = 128
NUM_LAYERS = 2


def _choose_chunk(T, max_chunk=64):
    """Largest divisor of T that is <= max_chunk (time-chunk size per grid step)."""
    for tc in range(min(T, max_chunk), 0, -1):
        if T % tc == 0:
            return tc
    return 1


def _rnn_kernel(pre0_ref, whh0_ref, wih1_ref, whh1_ref, b1_ref,
                h2_ref, hfin_ref,
                h1_scr, h2_scr, *, tc):
    c = pl.program_id(0)

    # Zero-initialize the carried hidden states on the first chunk
    # (PyTorch uses zeros when hidden=None).
    @pl.when(c == 0)
    def _():
        h1_scr[...] = jnp.zeros_like(h1_scr)
        h2_scr[...] = jnp.zeros_like(h2_scr)

    # Hoist weight / bias loads out of the inner time loop.
    whh0 = whh0_ref[...]
    wih1 = wih1_ref[...]
    whh1 = whh1_ref[...]
    b1 = b1_ref[...]

    def step(i, carry):
        h1, h2 = carry
        # layer 0: input projection (+ both layer-0 biases) was precomputed into pre0.
        h1n = jnp.tanh(
            pre0_ref[i]
            + jnp.dot(h1, whh0, preferred_element_type=jnp.float32)
        )
        # layer 1: b1 = b_ih1 + b_hh1 folded host-side.
        h2n = jnp.tanh(
            jnp.dot(h1n, wih1, preferred_element_type=jnp.float32)
            + jnp.dot(h2, whh1, preferred_element_type=jnp.float32)
            + b1
        )
        # Lane-dense (last dim 128) per-step store of the top-layer hidden state.
        h2_ref[i] = h2n
        return (h1n, h2n)

    h1, h2 = jax.lax.fori_loop(0, tc, step, (h1_scr[...], h2_scr[...]),
                               unroll=True)

    # Persist the carry across chunks.
    h1_scr[...] = h1
    h2_scr[...] = h2

    # Final hidden state (num_layers, B, HIDDEN): only write it on the last chunk.
    @pl.when(c == pl.num_programs(0) - 1)
    def _():
        hfin_ref[0] = h1
        hfin_ref[1] = h2


def rnn_forward(x, params):
    """x: (B, T, in_size) float32.  Returns (y, new_hidden) matching PyTorch:
       y: (B, T, out_size), new_hidden: (2, B, 128)."""
    B, T, in_size = x.shape
    out_size = params["w_fc"].shape[1]

    # Fold the paired biases host-side.
    b0 = params["b_ih0"] + params["b_hh0"]   # (1, HIDDEN)
    b1 = params["b_ih1"] + params["b_hh1"]   # (1, HIDDEN)

    # Hoisted layer-0 input projection for ALL timesteps, produced directly in
    # (T, B, HIDDEN) layout so the layout change is folded into the matmul.
    pre0 = jnp.einsum("bti,ih->tbh", x, params["w_ih0"]) + b0   # (T, B, HIDDEN)

    Tc = _choose_chunk(T)
    num_chunks = T // Tc

    full2d = lambda arr: pl.BlockSpec(arr.shape, lambda c: (0, 0))

    h2_all, h_final = pl.pallas_call(
        functools.partial(_rnn_kernel, tc=Tc),
        out_shape=(
            jax.ShapeDtypeStruct((T, B, HIDDEN), jnp.float32),
            jax.ShapeDtypeStruct((NUM_LAYERS, B, HIDDEN), jnp.float32),
        ),
        grid_spec=pltpu.PrefetchScalarGridSpec(
            num_scalar_prefetch=0,
            grid=(num_chunks,),
            in_specs=[
                pl.BlockSpec((Tc, B, HIDDEN), lambda c: (c, 0, 0)),  # pre0 time chunk
                full2d(params["w_hh0"]),
                full2d(params["w_ih1"]),
                full2d(params["w_hh1"]),
                full2d(b1),
            ],
            out_specs=[
                pl.BlockSpec((Tc, B, HIDDEN), lambda c: (c, 0, 0)),          # h2 per step
                pl.BlockSpec((NUM_LAYERS, B, HIDDEN), lambda c: (0, 0, 0)),  # final hidden
            ],
            scratch_shapes=[
                pltpu.VMEM((B, HIDDEN), jnp.float32),  # h1 carry across chunks
                pltpu.VMEM((B, HIDDEN), jnp.float32),  # h2 carry across chunks
            ],
        ),
        compiler_params=pltpu.CompilerParams(
            dimension_semantics=("arbitrary",),  # time recurrence — must be sequential
        ),
    )(pre0, params["w_hh0"], params["w_ih1"], params["w_hh1"], b1)

    # FC head on the full hidden sequence; the (T,B,·)->(B,T,·) transpose is folded
    # into this matmul as well.
    y = jnp.einsum("tbh,ho->bto", h2_all, params["w_fc"]) + params["b_fc"]
    return y, h_final


def init_params(key, in_size, out_size):
    """Deterministic synthetic params. Shapes match nn.RNN(in_size, 128, 2) + Linear(128, out_size),
       stored pre-transposed as (in_dim, out_dim)."""
    k = 1.0 / jnp.sqrt(jnp.float32(HIDDEN))
    keys = jax.random.split(key, 10)
    u = lambda kk, shape: jax.random.uniform(kk, shape, jnp.float32, -k, k)
    return {
        "w_ih0": u(keys[0], (in_size, HIDDEN)),
        "w_hh0": u(keys[1], (HIDDEN, HIDDEN)),
        "b_ih0": u(keys[2], (1, HIDDEN)),
        "b_hh0": u(keys[3], (1, HIDDEN)),
        "w_ih1": u(keys[4], (HIDDEN, HIDDEN)),
        "w_hh1": u(keys[5], (HIDDEN, HIDDEN)),
        "b_ih1": u(keys[6], (1, HIDDEN)),
        "b_hh1": u(keys[7], (1, HIDDEN)),
        "w_fc":  u(keys[8], (HIDDEN, out_size)),
        "b_fc":  u(keys[9], (1, out_size)),
    }


def rnn_forward_ref(x, params):
    """Pure-JAX reference (mirrors PyTorch nn.RNN tanh semantics)."""
    B, T, _ = x.shape

    def step(carry, x_t):
        h1, h2 = carry
        h1n = jnp.tanh(x_t @ params["w_ih0"] + params["b_ih0"]
                       + h1 @ params["w_hh0"] + params["b_hh0"])
        h2n = jnp.tanh(h1n @ params["w_ih1"] + params["b_ih1"]
                       + h2 @ params["w_hh1"] + params["b_hh1"])
        y_t = h2n @ params["w_fc"] + params["b_fc"]
        return (h1n, h2n), y_t

    h0 = jnp.zeros((B, HIDDEN), jnp.float32)
    (h1, h2), ys = jax.lax.scan(step, (h0, h0), jnp.transpose(x, (1, 0, 2)))
    return jnp.transpose(ys, (1, 0, 2)), jnp.stack([h1, h2], axis=0)


if __name__ == "__main__":
    B, T, IN_SIZE, OUT_SIZE = 2, 8, 16, 4

    key = jax.random.PRNGKey(0)
    kx, kp = jax.random.split(key)
    x = jax.random.normal(kx, (B, T, IN_SIZE), jnp.float32)
    params = init_params(kp, IN_SIZE, OUT_SIZE)

    y, new_hidden = rnn_forward(x, params)
    jax.block_until_ready((y, new_hidden))

    y_ref, h_ref = rnn_forward_ref(x, params)
    assert y.shape == (B, T, OUT_SIZE) and new_hidden.shape == (NUM_LAYERS, B, HIDDEN)
    assert jnp.allclose(y, y_ref, atol=1e-3, rtol=1e-3)
    assert jnp.allclose(new_hidden, h_ref, atol=1e-3, rtol=1e-3)

    print("KERNEL_OK")
</pallas_src>

<mosaic_0001>
module attributes {stable_mosaic.version = 11 : i64} {
  func.func @_rnn_kernel(%arg0: i32, %arg1: memref<8x2x128xf32, #tpu.memory_space<vmem>>, %arg2: memref<128x128xf32, #tpu.memory_space<vmem>>, %arg3: memref<128x128xf32, #tpu.memory_space<vmem>>, %arg4: memref<128x128xf32, #tpu.memory_space<vmem>>, %arg5: memref<1x128xf32, #tpu.memory_space<vmem>>, %arg6: memref<8x2x128xf32, #tpu.memory_space<vmem>>, %arg7: memref<2x2x128xf32, #tpu.memory_space<vmem>>, %arg8: memref<2x128xf32, #tpu.memory_space<vmem>>, %arg9: memref<2x128xf32, #tpu.memory_space<vmem>>) attributes {dimension_semantics = [#tpu.dimension_semantics<arbitrary>], iteration_bounds = array<i64: 1>, scalar_prefetch = 0 : i64, scratch_operands = 2 : i64, tpu.core_type = #tpu.core_type<tc>, window_params = [{transform_indices = @transform_0, window_bounds = array<i64: 8, 2, 128>}, {pipeline_mode = #tpu.pipeline_mode<synchronous>, transform_indices = @transform_1, window_bounds = array<i64: 128, 128>}, {pipeline_mode = #tpu.pipeline_mode<synchronous>, transform_indices = @transform_2, window_bounds = array<i64: 128, 128>}, {pipeline_mode = #tpu.pipeline_mode<synchronous>, transform_indices = @transform_3, window_bounds = array<i64: 128, 128>}, {pipeline_mode = #tpu.pipeline_mode<synchronous>, transform_indices = @transform_4, window_bounds = array<i64: 1, 128>}, {transform_indices = @transform_5, window_bounds = array<i64: 8, 2, 128>}, {pipeline_mode = #tpu.pipeline_mode<synchronous>, transform_indices = @transform_6, window_bounds = array<i64: 2, 2, 128>}]} {
    %c0_i32 = arith.constant 0 : i32
    %0 = arith.cmpi eq, %arg0, %c0_i32 : i32
    %1 = arith.extui %0 : i1 to i32
    %c0_i32_0 = arith.constant 0 : i32
    %2 = arith.cmpi ne, %1, %c0_i32_0 : i32
    scf.if %2 {
      %cst_74 = arith.constant 0.000000e+00 : f32
      %142 = vector.broadcast %cst_74 : f32 to vector<2x128xf32>
      %c0_75 = arith.constant 0 : index
      %c0_76 = arith.constant 0 : index
      %143 = vector.load %arg8[%c0_75, %c0_76] : memref<2x128xf32, #tpu.memory_space<vmem>>, vector<2x128xf32>
      tpu.vector_store %arg8[%c0_75, %c0_76], %142 {strides = array<i32>} : memref<2x128xf32, #tpu.memory_space<vmem>>, vector<2x128xf32>,
      %cst_77 = arith.constant 0.000000e+00 : f32
      %144 = vector.broadcast %cst_77 : f32 to vector<2x128xf32>
      %c0_78 = arith.constant 0 : index
      %c0_79 = arith.constant 0 : index
      %145 = vector.load %arg9[%c0_78, %c0_79] : memref<2x128xf32, #tpu.memory_space<vmem>>, vector<2x128xf32>
      tpu.vector_store %arg9[%c0_78, %c0_79], %144 {strides = array<i32>} : memref<2x128xf32, #tpu.memory_space<vmem>>, vector<2x128xf32>,
    } else {
    }
    %c0 = arith.constant 0 : index
    %c0_1 = arith.constant 0 : index
    %3 = vector.load %arg2[%c0, %c0_1] : memref<128x128xf32, #tpu.memory_space<vmem>>, vector<128x128xf32>
    %c0_2 = arith.constant 0 : index
    %c0_3 = arith.constant 0 : index
    %4 = vector.load %arg3[%c0_2, %c0_3] : memref<128x128xf32, #tpu.memory_space<vmem>>, vector<128x128xf32>
    %c0_4 = arith.constant 0 : index
    %c0_5 = arith.constant 0 : index
    %5 = vector.load %arg4[%c0_4, %c0_5] : memref<128x128xf32, #tpu.memory_space<vmem>>, vector<128x128xf32>
    %c0_6 = arith.constant 0 : index
    %c0_7 = arith.constant 0 : index
    %6 = vector.load %arg5[%c0_6, %c0_7] : memref<1x128xf32, #tpu.memory_space<vmem>>, vector<1x128xf32>
    %c0_8 = arith.constant 0 : index
    %c0_9 = arith.constant 0 : index
    %7 = vector.load %arg8[%c0_8, %c0_9] : memref<2x128xf32, #tpu.memory_space<vmem>>, vector<2x128xf32>
    %c0_10 = arith.constant 0 : index
    %c0_11 = arith.constant 0 : index
    %8 = vector.load %arg9[%c0_10, %c0_11] : memref<2x128xf32, #tpu.memory_space<vmem>>, vector<2x128xf32>
    %c0_i32_12 = arith.constant 0 : i32
    %9 = arith.index_cast %c0_i32_12 : i32 to index
    %c0_13 = arith.constant 0 : index
    %c0_14 = arith.constant 0 : index
    %10 = vector.load %arg1[%9, %c0_13, %c0_14] : memref<8x2x128xf32, #tpu.memory_space<vmem>>, vector<1x2x128xf32>
    %11 = vector.shape_cast %10 : vector<1x2x128xf32> to vector<2x128xf32>
    %cst = arith.constant dense<0.000000e+00> : vector<2x128xf32>
    %12 = tpu.matmul %7, %3, %cst {dimension_numbers = #tpu.dot_dimension_numbers<[1], [0], [0], [1], [0, 0, 1, 1], [], []>} : vector<2x128xf32>, vector<128x128xf32>, vector<2x128xf32> -> vector<2x128xf32>
    %13 = arith.addf %11, %12 : vector<2x128xf32>
    %14 = math.tanh %13 : vector<2x128xf32>
    %cst_15 = arith.constant dense<0.000000e+00> : vector<2x128xf32>
    %15 = tpu.matmul %14, %4, %cst_15 {dimension_numbers = #tpu.dot_dimension_numbers<[1], [0], [0], [1], [0, 0, 1, 1], [], []>} : vector<2x128xf32>, vector<128x128xf32>, vector<2x128xf32> -> vector<2x128xf32>
    %cst_16 = arith.constant dense<0.000000e+00> : vector<2x128xf32>
    %16 = tpu.matmul %8, %5, %cst_16 {dimension_numbers = #tpu.dot_dimension_numbers<[1], [0], [0], [1], [0, 0, 1, 1], [], []>} : vector<2x128xf32>, vector<128x128xf32>, vector<2x128xf32> -> vector<2x128xf32>
    %17 = arith.addf %15, %16 : vector<2x128xf32>
    %18 = vector.broadcast %6 : vector<1x128xf32> to vector<2x128xf32>
    %19 = arith.addf %17, %18 : vector<2x128xf32>
    %20 = math.tanh %19 : vector<2x128xf32>
    %21 = arith.index_cast %c0_i32_12 : i32 to index
    %c0_17 = arith.constant 0 : index
    %c0_18 = arith.constant 0 : index
    %22 = vector.load %arg6[%21, %c0_17, %c0_18] : memref<8x2x128xf32, #tpu.memory_space<vmem>>, vector<1x2x128xf32>
    %23 = vector.shape_cast %22 : vector<1x2x128xf32> to vector<2x128xf32>
    %24 = vector.shape_cast %20 : vector<2x128xf32> to vector<1x2x128xf32>
    tpu.vector_store %arg6[%21, %c0_17, %c0_18], %24 {strides = array<i32>} : memref<8x2x128xf32, #tpu.memory_space<vmem>>, vector<1x2x128xf32>,
    %c1_i32 = arith.constant 1 : i32
    %25 = arith.index_cast %c1_i32 : i32 to index
    %c0_19 = arith.constant 0 : index
    %c0_20 = arith.constant 0 : index
    %26 = vector.load %arg1[%25, %c0_19, %c0_20] : memref<8x2x128xf32, #tpu.memory_space<vmem>>, vector<1x2x128xf32>
    %27 = vector.shape_cast %26 : vector<1x2x128xf32> to vector<2x128xf32>
    %cst_21 = arith.constant dense<0.000000e+00> : vector<2x128xf32>
    %28 = tpu.matmul %14, %3, %cst_21 {dimension_numbers = #tpu.dot_dimension_numbers<[1], [0], [0], [1], [0, 0, 1, 1], [], []>} : vector<2x128xf32>, vector<128x128xf32>, vector<2x128xf32> -> vector<2x128xf32>
    %29 = arith.addf %27, %28 : vector<2x128xf32>
    %30 = math.tanh %29 : vector<2x128xf32>
    %cst_22 = arith.constant dense<0.000000e+00> : vector<2x128xf32>
    %31 = tpu.matmul %30, %4, %cst_22 {dimension_numbers = #tpu.dot_dimension_numbers<[1], [0], [0], [1], [0, 0, 1, 1], [], []>} : vector<2x128xf32>, vector<128x128xf32>, vector<2x128xf32> -> vector<2x128xf32>
    %cst_23 = arith.constant dense<0.000000e+00> : vector<2x128xf32>
    %32 = tpu.matmul %20, %5, %cst_23 {dimension_numbers = #tpu.dot_dimension_numbers<[1], [0], [0], [1], [0, 0, 1, 1], [], []>} : vector<2x128xf32>, vector<128x128xf32>, vector<2x128xf32> -> vector<2x128xf32>
    %33 = arith.addf %31, %32 : vector<2x128xf32>
    %34 = vector.broadcast %6 : vector<1x128xf32> to vector<2x128xf32>
    %35 = arith.addf %33, %34 : vector<2x128xf32>
    %36 = math.tanh %35 : vector<2x128xf32>
    %37 = arith.index_cast %c1_i32 : i32 to index
    %c0_24 = arith.constant 0 : index
    %c0_25 = arith.constant 0 : index
    %38 = vector.load %arg6[%37, %c0_24, %c0_25] : memref<8x2x128xf32, #tpu.memory_space<vmem>>, vector<1x2x128xf32>
    %39 = vector.shape_cast %38 : vector<1x2x128xf32> to vector<2x128xf32>
    %40 = vector.shape_cast %36 : vector<2x128xf32> to vector<1x2x128xf32>
    tpu.vector_store %arg6[%37, %c0_24, %c0_25], %40 {strides = array<i32>} : memref<8x2x128xf32, #tpu.memory_space<vmem>>, vector<1x2x128xf32>,
    %c2_i32 = arith.constant 2 : i32
    %41 = arith.index_cast %c2_i32 : i32 to index
    %c0_26 = arith.constant 0 : index
    %c0_27 = arith.constant 0 : index
    %42 = vector.load %arg1[%41, %c0_26, %c0_27] : memref<8x2x128xf32, #tpu.memory_space<vmem>>, vector<1x2x128xf32>
    %43 = vector.shape_cast %42 : vector<1x2x128xf32> to vector<2x128xf32>
    %cst_28 = arith.constant dense<0.000000e+00> : vector<2x128xf32>
    %44 = tpu.matmul %30, %3, %cst_28 {dimension_numbers = #tpu.dot_dimension_numbers<[1], [0], [0], [1], [0, 0, 1, 1], [], []>} : vector<2x128xf32>, vector<128x128xf32>, vector<2x128xf32> -> vector<2x128xf32>
    %45 = arith.addf %43, %44 : vector<2x128xf32>
    %46 = math.tanh %45 : vector<2x128xf32>
    %cst_29 = arith.constant dense<0.000000e+00> : vector<2x128xf32>
    %47 = tpu.matmul %46, %4, %cst_29 {dimension_numbers = #tpu.dot_dimension_numbers<[1], [0], [0], [1], [0, 0, 1, 1], [], []>} : vector<2x128xf32>, vector<128x128xf32>, vector<2x128xf32> -> vector<2x128xf32>
    %cst_30 = arith.constant dense<0.000000e+00> : vector<2x128xf32>
    %48 = tpu.matmul %36, %5, %cst_30 {dimension_numbers = #tpu.dot_dimension_numbers<[1], [0], [0], [1], [0, 0, 1, 1], [], []>} : vector<2x128xf32>, vector<128x128xf32>, vector<2x128xf32> -> vector<2x128xf32>
    %49 = arith.addf %47, %48 : vector<2x128xf32>
    %50 = vector.broadcast %6 : vector<1x128xf32> to vector<2x128xf32>
    %51 = arith.addf %49, %50 : vector<2x128xf32>
    %52 = math.tanh %51 : vector<2x128xf32>
    %53 = arith.index_cast %c2_i32 : i32 to index
    %c0_31 = arith.constant 0 : index
    %c0_32 = arith.constant 0 : index
    %54 = vector.load %arg6[%53, %c0_31, %c0_32] : memref<8x2x128xf32, #tpu.memory_space<vmem>>, vector<1x2x128xf32>
    %55 = vector.shape_cast %54 : vector<1x2x128xf32> to vector<2x128xf32>
    %56 = vector.shape_cast %52 : vector<2x128xf32> to vector<1x2x128xf32>
    tpu.vector_store %arg6[%53, %c0_31, %c0_32], %56 {strides = array<i32>} : memref<8x2x128xf32, #tpu.memory_space<vmem>>, vector<1x2x128xf32>,
    %c3_i32 = arith.constant 3 : i32
    %57 = arith.index_cast %c3_i32 : i32 to index
    %c0_33 = arith.constant 0 : index
    %c0_34 = arith.constant 0 : index
    %58 = vector.load %arg1[%57, %c0_33, %c0_34] : memref<8x2x128xf32, #tpu.memory_space<vmem>>, vector<1x2x128xf32>
    %59 = vector.shape_cast %58 : vector<1x2x128xf32> to vector<2x128xf32>
    %cst_35 = arith.constant dense<0.000000e+00> : vector<2x128xf32>
    %60 = tpu.matmul %46, %3, %cst_35 {dimension_numbers = #tpu.dot_dimension_numbers<[1], [0], [0], [1], [0, 0, 1, 1], [], []>} : vector<2x128xf32>, vector<128x128xf32>, vector<2x128xf32> -> vector<2x128xf32>
    %61 = arith.addf %59, %60 : vector<2x128xf32>
    %62 = math.tanh %61 : vector<2x128xf32>
    %cst_36 = arith.constant dense<0.000000e+00> : vector<2x128xf32>
    %63 = tpu.matmul %62, %4, %cst_36 {dimension_numbers = #tpu.dot_dimension_numbers<[1], [0], [0], [1], [0, 0, 1, 1], [], []>} : vector<2x128xf32>, vector<128x128xf32>, vector<2x128xf32> -> vector<2x128xf32>
    %cst_37 = arith.constant dense<0.000000e+00> : vector<2x128xf32>
    %64 = tpu.matmul %52, %5, %cst_37 {dimension_numbers = #tpu.dot_dimension_numbers<[1], [0], [0], [1], [0, 0, 1, 1], [], []>} : vector<2x128xf32>, vector<128x128xf32>, vector<2x128xf32> -> vector<2x128xf32>
    %65 = arith.addf %63, %64 : vector<2x128xf32>
    %66 = vector.broadcast %6 : vector<1x128xf32> to vector<2x128xf32>
    %67 = arith.addf %65, %66 : vector<2x128xf32>
    %68 = math.tanh %67 : vector<2x128xf32>
    %69 = arith.index_cast %c3_i32 : i32 to index
    %c0_38 = arith.constant 0 : index
    %c0_39 = arith.constant 0 : index
    %70 = vector.load %arg6[%69, %c0_38, %c0_39] : memref<8x2x128xf32, #tpu.memory_space<vmem>>, vector<1x2x128xf32>
    %71 = vector.shape_cast %70 : vector<1x2x128xf32> to vector<2x128xf32>
    %72 = vector.shape_cast %68 : vector<2x128xf32> to vector<1x2x128xf32>
    tpu.vector_store %arg6[%69, %c0_38, %c0_39], %72 {strides = array<i32>} : memref<8x2x128xf32, #tpu.memory_space<vmem>>, vector<1x2x128xf32>,
    %c4_i32 = arith.constant 4 : i32
    %73 = arith.index_cast %c4_i32 : i32 to index
    %c0_40 = arith.constant 0 : index
    %c0_41 = arith.constant 0 : index
    %74 = vector.load %arg1[%73, %c0_40, %c0_41] : memref<8x2x128xf32, #tpu.memory_space<vmem>>, vector<1x2x128xf32>
    %75 = vector.shape_cast %74 : vector<1x2x128xf32> to vector<2x128xf32>
    %cst_42 = arith.constant dense<0.000000e+00> : vector<2x128xf32>
    %76 = tpu.matmul %62, %3, %cst_42 {dimension_numbers = #tpu.dot_dimension_numbers<[1], [0], [0], [1], [0, 0, 1, 1], [], []>} : vector<2x128xf32>, vector<128x128xf32>, vector<2x128xf32> -> vector<2x128xf32>
    %77 = arith.addf %75, %76 : vector<2x128xf32>
    %78 = math.tanh %77 : vector<2x128xf32>
    %cst_43 = arith.constant dense<0.000000e+00> : vector<2x128xf32>
    %79 = tpu.matmul %78, %4, %cst_43 {dimension_numbers = #tpu.dot_dimension_numbers<[1], [0], [0], [1], [0, 0, 1, 1], [], []>} : vector<2x128xf32>, vector<128x128xf32>, vector<2x128xf32> -> vector<2x128xf32>
    %cst_44 = arith.constant dense<0.000000e+00> : vector<2x128xf32>
    %80 = tpu.matmul %68, %5, %cst_44 {dimension_numbers = #tpu.dot_dimension_numbers<[1], [0], [0], [1], [0, 0, 1, 1], [], []>} : vector<2x128xf32>, vector<128x128xf32>, vector<2x128xf32> -> vector<2x128xf32>
    %81 = arith.addf %79, %80 : vector<2x128xf32>
    %82 = vector.broadcast %6 : vector<1x128xf32> to vector<2x128xf32>
    %83 = arith.addf %81, %82 : vector<2x128xf32>
    %84 = math.tanh %83 : vector<2x128xf32>
    %85 = arith.index_cast %c4_i32 : i32 to index
    %c0_45 = arith.constant 0 : index
    %c0_46 = arith.constant 0 : index
    %86 = vector.load %arg6[%85, %c0_45, %c0_46] : memref<8x2x128xf32, #tpu.memory_space<vmem>>, vector<1x2x128xf32>
    %87 = vector.shape_cast %86 : vector<1x2x128xf32> to vector<2x128xf32>
    %88 = vector.shape_cast %84 : vector<2x128xf32> to vector<1x2x128xf32>
    tpu.vector_store %arg6[%85, %c0_45, %c0_46], %88 {strides = array<i32>} : memref<8x2x128xf32, #tpu.memory_space<vmem>>, vector<1x2x128xf32>,
    %c5_i32 = arith.constant 5 : i32
    %89 = arith.index_cast %c5_i32 : i32 to index
    %c0_47 = arith.constant 0 : index
    %c0_48 = arith.constant 0 : index
    %90 = vector.load %arg1[%89, %c0_47, %c0_48] : memref<8x2x128xf32, #tpu.memory_space<vmem>>, vector<1x2x128xf32>
    %91 = vector.shape_cast %90 : vector<1x2x128xf32> to vector<2x128xf32>
    %cst_49 = arith.constant dense<0.000000e+00> : vector<2x128xf32>
    %92 = tpu.matmul %78, %3, %cst_49 {dimension_numbers = #tpu.dot_dimension_numbers<[1], [0], [0], [1], [0, 0, 1, 1], [], []>} : vector<2x128xf32>, vector<128x128xf32>, vector<2x128xf32> -> vector<2x128xf32>
    %93 = arith.addf %91, %92 : vector<2x128xf32>
    %94 = math.tanh %93 : vector<2x128xf32>
    %cst_50 = arith.constant dense<0.000000e+00> : vector<2x128xf32>
    %95 = tpu.matmul %94, %4, %cst_50 {dimension_numbers = #tpu.dot_dimension_numbers<[1], [0], [0], [1], [0, 0, 1, 1], [], []>} : vector<2x128xf32>, vector<128x128xf32>, vector<2x128xf32> -> vector<2x128xf32>
    %cst_51 = arith.constant dense<0.000000e+00> : vector<2x128xf32>
    %96 = tpu.matmul %84, %5, %cst_51 {dimension_numbers = #tpu.dot_dimension_numbers<[1], [0], [0], [1], [0, 0, 1, 1], [], []>} : vector<2x128xf32>, vector<128x128xf32>, vector<2x128xf32> -> vector<2x128xf32>
    %97 = arith.addf %95, %96 : vector<2x128xf32>
    %98 = vector.broadcast %6 : vector<1x128xf32> to vector<2x128xf32>
    %99 = arith.addf %97, %98 : vector<2x128xf32>
    %100 = math.tanh %99 : vector<2x128xf32>
    %101 = arith.index_cast %c5_i32 : i32 to index
    %c0_52 = arith.constant 0 : index
    %c0_53 = arith.constant 0 : index
    %102 = vector.load %arg6[%101, %c0_52, %c0_53] : memref<8x2x128xf32, #tpu.memory_space<vmem>>, vector<1x2x128xf32>
    %103 = vector.shape_cast %102 : vector<1x2x128xf32> to vector<2x128xf32>
    %104 = vector.shape_cast %100 : vector<2x128xf32> to vector<1x2x128xf32>
    tpu.vector_store %arg6[%101, %c0_52, %c0_53], %104 {strides = array<i32>} : memref<8x2x128xf32, #tpu.memory_space<vmem>>, vector<1x2x128xf32>,
    %c6_i32 = arith.constant 6 : i32
    %105 = arith.index_cast %c6_i32 : i32 to index
    %c0_54 = arith.constant 0 : index
    %c0_55 = arith.constant 0 : index
    %106 = vector.load %arg1[%105, %c0_54, %c0_55] : memref<8x2x128xf32, #tpu.memory_space<vmem>>, vector<1x2x128xf32>
    %107 = vector.shape_cast %106 : vector<1x2x128xf32> to vector<2x128xf32>
    %cst_56 = arith.constant dense<0.000000e+00> : vector<2x128xf32>
    %108 = tpu.matmul %94, %3, %cst_56 {dimension_numbers = #tpu.dot_dimension_numbers<[1], [0], [0], [1], [0, 0, 1, 1], [], []>} : vector<2x128xf32>, vector<128x128xf32>, vector<2x128xf32> -> vector<2x128xf32>
    %109 = arith.addf %107, %108 : vector<2x128xf32>
    %110 = math.tanh %109 : vector<2x128xf32>
    %cst_57 = arith.constant dense<0.000000e+00> : vector<2x128xf32>
    %111 = tpu.matmul %110, %4, %cst_57 {dimension_numbers = #tpu.dot_dimension_numbers<[1], [0], [0], [1], [0, 0, 1, 1], [], []>} : vector<2x128xf32>, vector<128x128xf32>, vector<2x128xf32> -> vector<2x128xf32>
    %cst_58 = arith.constant dense<0.000000e+00> : vector<2x128xf32>
    %112 = tpu.matmul %100, %5, %cst_58 {dimension_numbers = #tpu.dot_dimension_numbers<[1], [0], [0], [1], [0, 0, 1, 1], [], []>} : vector<2x128xf32>, vector<128x128xf32>, vector<2x128xf32> -> vector<2x128xf32>
    %113 = arith.addf %111, %112 : vector<2x128xf32>
    %114 = vector.broadcast %6 : vector<1x128xf32> to vector<2x128xf32>
    %115 = arith.addf %113, %114 : vector<2x128xf32>
    %116 = math.tanh %115 : vector<2x128xf32>
    %117 = arith.index_cast %c6_i32 : i32 to index
    %c0_59 = arith.constant 0 : index
    %c0_60 = arith.constant 0 : index
    %118 = vector.load %arg6[%117, %c0_59, %c0_60] : memref<8x2x128xf32, #tpu.memory_space<vmem>>, vector<1x2x128xf32>
    %119 = vector.shape_cast %118 : vector<1x2x128xf32> to vector<2x128xf32>
    %120 = vector.shape_cast %116 : vector<2x128xf32> to vector<1x2x128xf32>
    tpu.vector_store %arg6[%117, %c0_59, %c0_60], %120 {strides = array<i32>} : memref<8x2x128xf32, #tpu.memory_space<vmem>>, vector<1x2x128xf32>,
    %c7_i32 = arith.constant 7 : i32
    %121 = arith.index_cast %c7_i32 : i32 to index
    %c0_61 = arith.constant 0 : index
    %c0_62 = arith.constant 0 : index
    %122 = vector.load %arg1[%121, %c0_61, %c0_62] : memref<8x2x128xf32, #tpu.memory_space<vmem>>, vector<1x2x128xf32>
    %123 = vector.shape_cast %122 : vector<1x2x128xf32> to vector<2x128xf32>
    %cst_63 = arith.constant dense<0.000000e+00> : vector<2x128xf32>
    %124 = tpu.matmul %110, %3, %cst_63 {dimension_numbers = #tpu.dot_dimension_numbers<[1], [0], [0], [1], [0, 0, 1, 1], [], []>} : vector<2x128xf32>, vector<128x128xf32>, vector<2x128xf32> -> vector<2x128xf32>
    %125 = arith.addf %123, %124 : vector<2x128xf32>
    %126 = math.tanh %125 : vector<2x128xf32>
    %cst_64 = arith.constant dense<0.000000e+00> : vector<2x128xf32>
    %127 = tpu.matmul %126, %4, %cst_64 {dimension_numbers = #tpu.dot_dimension_numbers<[1], [0], [0], [1], [0, 0, 1, 1], [], []>} : vector<2x128xf32>, vector<128x128xf32>, vector<2x128xf32> -> vector<2x128xf32>
    %cst_65 = arith.constant dense<0.000000e+00> : vector<2x128xf32>
    %128 = tpu.matmul %116, %5, %cst_65 {dimension_numbers = #tpu.dot_dimension_numbers<[1], [0], [0], [1], [0, 0, 1, 1], [], []>} : vector<2x128xf32>, vector<128x128xf32>, vector<2x128xf32> -> vector<2x128xf32>
    %129 = arith.addf %127, %128 : vector<2x128xf32>
    %130 = vector.broadcast %6 : vector<1x128xf32> to vector<2x128xf32>
    %131 = arith.addf %129, %130 : vector<2x128xf32>
    %132 = math.tanh %131 : vector<2x128xf32>
    %133 = arith.index_cast %c7_i32 : i32 to index
    %c0_66 = arith.constant 0 : index
    %c0_67 = arith.constant 0 : index
    %134 = vector.load %arg6[%133, %c0_66, %c0_67] : memref<8x2x128xf32, #tpu.memory_space<vmem>>, vector<1x2x128xf32>
    %135 = vector.shape_cast %134 : vector<1x2x128xf32> to vector<2x128xf32>
    %136 = vector.shape_cast %132 : vector<2x128xf32> to vector<1x2x128xf32>
    tpu.vector_store %arg6[%133, %c0_66, %c0_67], %136 {strides = array<i32>} : memref<8x2x128xf32, #tpu.memory_space<vmem>>, vector<1x2x128xf32>,
    %c8_i32 = arith.constant 8 : i32
    %c0_68 = arith.constant 0 : index
    %c0_69 = arith.constant 0 : index
    %137 = vector.load %arg8[%c0_68, %c0_69] : memref<2x128xf32, #tpu.memory_space<vmem>>, vector<2x128xf32>
    tpu.vector_store %arg8[%c0_68, %c0_69], %126 {strides = array<i32>} : memref<2x128xf32, #tpu.memory_space<vmem>>, vector<2x128xf32>,
    %c0_70 = arith.constant 0 : index
    %c0_71 = arith.constant 0 : index
    %138 = vector.load %arg9[%c0_70, %c0_71] : memref<2x128xf32, #tpu.memory_space<vmem>>, vector<2x128xf32>
    tpu.vector_store %arg9[%c0_70, %c0_71], %132 {strides = array<i32>} : memref<2x128xf32, #tpu.memory_space<vmem>>, vector<2x128xf32>,
    %c0_i32_72 = arith.constant 0 : i32
    %139 = arith.cmpi eq, %arg0, %c0_i32_72 : i32
    %140 = arith.extui %139 : i1 to i32
    %c0_i32_73 = arith.constant 0 : i32
    %141 = arith.cmpi ne, %140, %c0_i32_73 : i32
    scf.if %141 {
      %c0_74 = arith.constant 0 : index
      %c0_75 = arith.constant 0 : index
      %c0_76 = arith.constant 0 : index
      %142 = vector.load %arg7[%c0_74, %c0_75, %c0_76] : memref<2x2x128xf32, #tpu.memory_space<vmem>>, vector<1x2x128xf32>
      %143 = vector.shape_cast %142 : vector<1x2x128xf32> to vector<2x128xf32>
      %144 = vector.shape_cast %126 : vector<2x128xf32> to vector<1x2x128xf32>
      tpu.vector_store %arg7[%c0_74, %c0_75, %c0_76], %144 {strides = array<i32>} : memref<2x2x128xf32, #tpu.memory_space<vmem>>, vector<1x2x128xf32>,
      %c1 = arith.constant 1 : index
      %c0_77 = arith.constant 0 : index
      %c0_78 = arith.constant 0 : index
      %145 = vector.load %arg7[%c1, %c0_77, %c0_78] : memref<2x2x128xf32, #tpu.memory_space<vmem>>, vector<1x2x128xf32>
      %146 = vector.shape_cast %145 : vector<1x2x128xf32> to vector<2x128xf32>
      %147 = vector.shape_cast %132 : vector<2x128xf32> to vector<1x2x128xf32>
      tpu.vector_store %arg7[%c1, %c0_77, %c0_78], %147 {strides = array<i32>} : memref<2x2x128xf32, #tpu.memory_space<vmem>>, vector<1x2x128xf32>,
    } else {
    }
    return
  }
  func.func @transform_0(%arg0: i32) -> (i32, i32, i32) {
    %c0_i32 = arith.constant 0 : i32
    %c0_i32_0 = arith.constant 0 : i32
    %c0_i32_1 = arith.constant 0 : i32
    return %arg0, %c0_i32, %c0_i32_0 : i32, i32, i32
  }
  func.func @transform_1(%arg0: i32) -> (i32, i32) {
    %c0_i32 = arith.constant 0 : i32
    %c0_i32_0 = arith.constant 0 : i32
    %c0_i32_1 = arith.constant 0 : i32
    return %c0_i32, %c0_i32_0 : i32, i32
  }
  func.func @transform_2(%arg0: i32) -> (i32, i32) {
    %c0_i32 = arith.constant 0 : i32
    %c0_i32_0 = arith.constant 0 : i32
    %c0_i32_1 = arith.constant 0 : i32
    return %c0_i32, %c0_i32_0 : i32, i32
  }
  func.func @transform_3(%arg0: i32) -> (i32, i32) {
    %c0_i32 = arith.constant 0 : i32
    %c0_i32_0 = arith.constant 0 : i32
    %c0_i32_1 = arith.constant 0 : i32
    return %c0_i32, %c0_i32_0 : i32, i32
  }
  func.func @transform_4(%arg0: i32) -> (i32, i32) {
    %c0_i32 = arith.constant 0 : i32
    %c0_i32_0 = arith.constant 0 : i32
    %c0_i32_1 = arith.constant 0 : i32
    return %c0_i32, %c0_i32_0 : i32, i32
  }
  func.func @transform_5(%arg0: i32) -> (i32, i32, i32) {
    %c0_i32 = arith.constant 0 : i32
    %c0_i32_0 = arith.constant 0 : i32
    %c0_i32_1 = arith.constant 0 : i32
    return %arg0, %c0_i32, %c0_i32_0 : i32, i32, i32
  }
  func.func @transform_6(%arg0: i32) -> (i32, i32, i32) {
    %c0_i32 = arith.constant 0 : i32
    %c0_i32_0 = arith.constant 0 : i32
    %c0_i32_1 = arith.constant 0 : i32
    %c0_i32_2 = arith.constant 0 : i32
    return %c0_i32, %c0_i32_0, %c0_i32_1 : i32, i32, i32
  }
}

</mosaic_0001>

<llo_original>
// kernel: tpu_custom_call.1
$region0: #{tpu_custom_call.1}
  #allocation0 [shape = 'u32[]', space=smem, size = 0x4, offset = 0x4, fixed_abs, tag = 'smem constant byte address 0x4 - core index']
  #allocation1 [shape = 'u32[72,128]{1,0:T(1,128)}', space=vmem, size = 0x9000, scoped, tag = 'internal scratch']
  #allocation2 [shape = 'f32[2,128]{1,0:T(2,128)}', space=vmem, size = 0x400, scoped, tag = 'scratch operand']
  #allocation3 [shape = 'f32[2,128]{1,0:T(2,128)}', space=vmem, size = 0x400, scoped, tag = 'scratch operand']
  %s0 = inlined_call_operand.hbm [shape: f32[8,2,128], index: 0, kind: input, shape index: {}]
  %s1 = inlined_call_operand.hbm [shape: f32[128,128], index: 1, kind: input, shape index: {}]
  %s2 = inlined_call_operand.hbm [shape: f32[128,128], index: 2, kind: input, shape index: {}]
  %s3 = inlined_call_operand.hbm [shape: f32[128,128], index: 3, kind: input, shape index: {}]
  %s4 = inlined_call_operand.vmem [shape: f32[1,128], index: 4, kind: input, shape index: {}]
  %s5 = inlined_call_operand.hbm [shape: f32[8,2,128], index: 5, kind: output, shape index: {0}]
  %s6 = inlined_call_operand.hbm [shape: f32[2,2,128], index: 6, kind: output, shape index: {1}]
  %7 = xla_tuple %s5, %s6
  %s8 = sld [smem:[#allocation0]]
  $region62: #{tpu_custom_call.1} parent=0
    _
  %s10 = ssub.s32 1, %s8
  %s11 = scalar_select 0, %s10, %s8
  $region1: #{tpu_custom_call.1} parent=0
    #allocation4 [shape = 'u8[8192]{0}', space=vmem, size = 0x2000, scoped, tag = 'input window, operand 0, single buffered']
    #allocation5 [shape = 's32[1]{0}', space=sflag, size = 0x4, scoped, tag = 'scoped memory for tpu_custom_call.1']
    #allocation6 [shape = 's32[1]{0}', space=sflag, size = 0x4, scoped, tag = 'scoped memory for tpu_custom_call.1']
    #allocation7 [shape = 'u8[65536]{0}', space=vmem, size = 0x10000, scoped, tag = 'input window, operand 1, single buffered']
    #allocation8 [shape = 's32[1]{0}', space=sflag, size = 0x4, scoped, tag = 'scoped memory for tpu_custom_call.1']
    #allocation9 [shape = 'u8[65536]{0}', space=vmem, size = 0x10000, scoped, tag = 'input window, operand 2, single buffered']
    #allocation10 [shape = 'u8[65536]{0}', space=vmem, size = 0x10000, scoped, tag = 'input window, operand 3, single buffered']
    #allocation11 [shape = 's32[1]{0}', space=sflag, size = 0x4, scoped, tag = 'scoped memory for tpu_custom_call.1']
    #allocation12 [shape = 'u8[8192]{0}', space=vmem, size = 0x2000, scoped, tag = 'output window, operand 0, single buffered']
    #allocation13 [shape = 'u8[2048]{0}', space=vmem, size = 0x800, scoped, tag = 'output window, operand 1, single buffered']
    #allocation14 [shape = 's32[1]{0}', space=sflag, size = 0x4, scoped, tag = 'scoped memory for tpu_custom_call.1']
    %12 = vsyncpa [#allocation5], 0
    %13 = vsyncpa [#allocation8], 0
    %14 = vsyncpa [#allocation11], 0
    %15 = vsyncpa [#allocation6], 0
    %16 = vsyncpa [#allocation14], 0
    // Predicated region
    $region2: #{tpu_custom_call.1} parent=1 // pred_check
      _
    $region3: #{tpu_custom_call.1} parent=1 // pred_check_branch
      %18 = sbr.rel (0) target = $region5
    $region4: #{tpu_custom_call.1} parent=1 // pred_region
      %20 = vsyncadd [#allocation5], 0
      %s21 = sshll.u32 %s0, 4
      %s22 = int_to_ptr.hbm [resolvable:$true] %s21
      %s23 = sshll.u32 [#allocation4], 4
      %s24 = int_to_ptr.vmem [resolvable:$true] %s23
      %29 = dma.hbm_to_vmem [thread:$0]  %s22, 256, %s24, [#allocation5], 32, 32, 2
    $region5: #{tpu_custom_call.1} parent=1 // pred_fallthru
      _
    // Predicated region
    $region6: #{tpu_custom_call.1} parent=1 // pred_check
      _
    $region7: #{tpu_custom_call.1} parent=1 // pred_check_branch
      %31 = sbr.rel (0) target = $region9
    $region8: #{tpu_custom_call.1} parent=1 // pred_region
      %33 = vsyncadd [#allocation8], 0
      %s34 = sshll.u32 %s1, 4
      %s35 = int_to_ptr.hbm [resolvable:$true] %s34
      %s36 = sshll.u32 [#allocation7], 4
      %s37 = int_to_ptr.vmem [resolvable:$true] %s36
      %42 = dma.hbm_to_vmem [thread:$0]  %s35, 2048, %s37, [#allocation8], 128, 128, 8
    $region9: #{tpu_custom_call.1} parent=1 // pred_fallthru
      _
    // Predicated region
    $region10: #{tpu_custom_call.1} parent=1 // pred_check
      _
    $region11: #{tpu_custom_call.1} parent=1 // pred_check_branch
      %44 = sbr.rel (0) target = $region13
    $region12: #{tpu_custom_call.1} parent=1 // pred_region
      %46 = vsyncadd [#allocation8], 0
      %s47 = sshll.u32 %s2, 4
      %s48 = int_to_ptr.hbm [resolvable:$true] %s47
      %s49 = sshll.u32 [#allocation9], 4
      %s50 = int_to_ptr.vmem [resolvable:$true] %s49
      %55 = dma.hbm_to_vmem [thread:$0]  %s48, 2048, %s50, [#allocation8], 128, 128, 8
    $region13: #{tpu_custom_call.1} parent=1 // pred_fallthru
      _
    // Predicated region
    $region14: #{tpu_custom_call.1} parent=1 // pred_check
      _
    $region15: #{tpu_custom_call.1} parent=1 // pred_check_branch
      %57 = sbr.rel (0) target = $region17
    $region16: #{tpu_custom_call.1} parent=1 // pred_region
      %59 = vsyncadd [#allocation11], 0
      %s60 = sshll.u32 %s3, 4
      %s61 = int_to_ptr.hbm [resolvable:$true] %s60
      %s62 = sshll.u32 [#allocation10], 4
      %s63 = int_to_ptr.vmem [resolvable:$true] %s62
      %68 = dma.hbm_to_vmem [thread:$0]  %s61, 2048, %s63, [#allocation11], 128, 128, 8
    $region17: #{tpu_custom_call.1} parent=1 // pred_fallthru
      _
    // Predicated region
    $region18: #{tpu_custom_call.1} parent=1 // pred_check
      _
    $region19: #{tpu_custom_call.1} parent=1 // pred_check_branch
      %70 = sbr.rel (0) target = $region21
    $region20: #{tpu_custom_call.1} parent=1 // pred_region
      _
    $region21: #{tpu_custom_call.1} parent=1 // pred_fallthru
      _
    // Predicated region
    $region22: #{tpu_custom_call.1} parent=1 // pred_check
      _
    $region23: #{tpu_custom_call.1} parent=1 // pred_check_branch
      %72 = sbr.rel (0) target = $region25
    $region24: #{tpu_custom_call.1} parent=1 // pred_region
      %74 = dma.done [#allocation5], 256
    $region25: #{tpu_custom_call.1} parent=1 // pred_fallthru
      _
    // Predicated region
    $region26: #{tpu_custom_call.1} parent=1 // pred_check
      _
    $region27: #{tpu_custom_call.1} parent=1 // pred_check_branch
      %76 = sbr.rel (0) target = $region29
    $region28: #{tpu_custom_call.1} parent=1 // pred_region
      %78 = dma.done [#allocation8], 2048
    $region29: #{tpu_custom_call.1} parent=1 // pred_fallthru
      _
    // Predicated region
    $region30: #{tpu_custom_call.1} parent=1 // pred_check
      _
    $region31: #{tpu_custom_call.1} parent=1 // pred_check_branch
      %80 = sbr.rel (0) target = $region33
    $region32: #{tpu_custom_call.1} parent=1 // pred_region
      %82 = dma.done [#allocation8], 2048
    $region33: #{tpu_custom_call.1} parent=1 // pred_fallthru
      _
    // Predicated region
    $region34: #{tpu_custom_call.1} parent=1 // pred_check
      _
    $region35: #{tpu_custom_call.1} parent=1 // pred_check_branch
      %84 = sbr.rel (0) target = $region37
    $region36: #{tpu_custom_call.1} parent=1 // pred_region
      %86 = dma.done [#allocation11], 2048
    $region37: #{tpu_custom_call.1} parent=1 // pred_fallthru
      _
    %p87 = scmp.eq.s32.totalorder 0, 0
    // Predicated region
    $region38: #{tpu_custom_call.1} parent=1 // pred_check
      %p88 = pneg %p87
    $region39: #{tpu_custom_call.1} parent=1 // pred_check_branch
      %90 = sbr.rel (%p88) target = $region41
    $region40: #{tpu_custom_call.1} parent=1 // pred_region
      %91 = vst [vmem:[#allocation2] sm:$0x3] 0.0
      %92 = vst [vmem:[#allocation3] sm:$0x3] 0.0
    $region41: #{tpu_custom_call.1} parent=1 // pred_fallthru
      _
    %v93 = vld [vmem:[#allocation7] sm:$0xff]
    %v94 = vld [vmem:[#allocation7 + $0x8] sm:$0xff]
    %v95 = vld [vmem:[#allocation7 + $0x10] sm:$0xff]
    %v96 = vld [vmem:[#allocation7 + $0x18] sm:$0xff]
    %v97 = vld [vmem:[#allocation7 + $0x20] sm:$0xff]
    %v98 = vld [vmem:[#allocation7 + $0x28] sm:$0xff]
    %v99 = vld [vmem:[#allocation7 + $0x30] sm:$0xff]
    %v100 = vld [vmem:[#allocation7 + $0x38] sm:$0xff]
    %v101 = vld [vmem:[#allocation7 + $0x40] sm:$0xff]
    %v102 = vld [vmem:[#allocation7 + $0x48] sm:$0xff]
    %v103 = vld [vmem:[#allocation7 + $0x50] sm:$0xff]
    %v104 = vld [vmem:[#allocation7 + $0x58] sm:$0xff]
    %v105 = vld [vmem:[#allocation7 + $0x60] sm:$0xff]
    %v106 = vld [vmem:[#allocation7 + $0x68] sm:$0xff]
    %v107 = vld [vmem:[#allocation7 + $0x70] sm:$0xff]
    %v108 = vld [vmem:[#allocation7 + $0x78] sm:$0xff]
    %v109 = vld [vmem:[#allocation9] sm:$0xff]
    %v110 = vld [vmem:[#allocation9 + $0x8] sm:$0xff]
    %v111 = vld [vmem:[#allocation9 + $0x10] sm:$0xff]
    %v112 = vld [vmem:[#allocation9 + $0x18] sm:$0xff]
    %v113 = vld [vmem:[#allocation9 + $0x20] sm:$0xff]
    %v114 = vld [vmem:[#allocation9 + $0x28] sm:$0xff]
    %v115 = vld [vmem:[#allocation9 + $0x30] sm:$0xff]
    %v116 = vld [vmem:[#allocation9 + $0x38] sm:$0xff]
    %v117 = vld [vmem:[#allocation9 + $0x40] sm:$0xff]
    %v118 = vld [vmem:[#allocation9 + $0x48] sm:$0xff]
    %v119 = vld [vmem:[#allocation9 + $0x50] sm:$0xff]
    %v120 = vld [vmem:[#allocation9 + $0x58] sm:$0xff]
    %v121 = vld [vmem:[#allocation9 + $0x60] sm:$0xff]
    %v122 = vld [vmem:[#allocation9 + $0x68] sm:$0xff]
    %v123 = vld [vmem:[#allocation9 + $0x70] sm:$0xff]
    %v124 = vld [vmem:[#allocation9 + $0x78] sm:$0xff]
    %v125 = vld [vmem:[#allocation10] sm:$0xff]
    %v126 = vld [vmem:[#allocation10 + $0x8] sm:$0xff]
    %v127 = vld [vmem:[#allocation10 + $0x10] sm:$0xff]
    %v128 = vld [vmem:[#allocation10 + $0x18] sm:$0xff]
    %v129 = vld [vmem:[#allocation10 + $0x20] sm:$0xff]
    %v130 = vld [vmem:[#allocation10 + $0x28] sm:$0xff]
    %v131 = vld [vmem:[#allocation10 + $0x30] sm:$0xff]
    %v132 = vld [vmem:[#allocation10 + $0x38] sm:$0xff]
    %v133 = vld [vmem:[#allocation10 + $0x40] sm:$0xff]
    %v134 = vld [vmem:[#allocation10 + $0x48] sm:$0xff]
    %v135 = vld [vmem:[#allocation10 + $0x50] sm:$0xff]
    %v136 = vld [vmem:[#allocation10 + $0x58] sm:$0xff]
    %v137 = vld [vmem:[#allocation10 + $0x60] sm:$0xff]
    %v138 = vld [vmem:[#allocation10 + $0x68] sm:$0xff]
    %v139 = vld [vmem:[#allocation10 + $0x70] sm:$0xff]
    %v140 = vld [vmem:[#allocation10 + $0x78] sm:$0xff]
    %v141 = vld [vmem:[%s4] sm:$0x1]
    %v142 = vld [vmem:[#allocation2] sm:$0x3]
    %v143 = vld [vmem:[#allocation3] sm:$0x3]
    %v144 = vld [vmem:[#allocation4] sm:$0x3]
    %145 = vmatpush.msra.mxu0 %v108
    %146 = vmatpush.msra.mxu0 %v107
    %147 = vmatpush.msra.mxu0 %v106
    %148 = vmatpush.msra.mxu0 %v105
    %149 = vmatpush.msra.mxu0 %v104
    %150 = vmatpush.msra.mxu0 %v103
    %151 = vmatpush.msra.mxu0 %v102
    %152 = vmatpush.msra.mxu0 %v101
    %153 = vmatpush.msra.mxu0 %v100
    %154 = vmatpush.msra.mxu0 %v99
    %155 = vmatpush.msra.mxu0 %v98
    %156 = vmatpush.msra.mxu0 %v97
    %157 = vmatpush.msra.mxu0 %v96
    %158 = vmatpush.msra.mxu0 %v95
    %159 = vmatpush.msra.mxu0 %v94
    %160 = vmatpush.msra.mxu0 %v93
    %161 = vmatmul.f32.gmra.mxu0 %v142
    %v162 = vpop.f32.mrf.mxu0
    %v163 = vadd.f32 0.0, %v162
    %164 = vdwg.mxu0
    %v165 = vadd.f32 %v144, %v163
    %v166 = vtanh.pop %v165
    %167 = vmatpush.msra.mxu0 %v140
    %168 = vmatpush.msra.mxu0 %v139
    %169 = vmatpush.msra.mxu0 %v138
    %170 = vmatpush.msra.mxu0 %v137
    %171 = vmatpush.msra.mxu0 %v136
    %172 = vmatpush.msra.mxu0 %v135
    %173 = vmatpush.msra.mxu0 %v134
    %174 = vmatpush.msra.mxu0 %v133
    %175 = vmatpush.msra.mxu0 %v132
    %176 = vmatpush.msra.mxu0 %v131
    %177 = vmatpush.msra.mxu0 %v130
    %178 = vmatpush.msra.mxu0 %v129
    %179 = vmatpush.msra.mxu0 %v128
    %180 = vmatpush.msra.mxu0 %v127
    %181 = vmatpush.msra.mxu0 %v126
    %182 = vmatpush.msra.mxu0 %v125
    %183 = vmatmul.f32.gmra.mxu0 %v143
    %v184 = vpop.f32.mrf.mxu0
    %v185 = vadd.f32 0.0, %v184
    %186 = vdwg.mxu0
    %187 = vmatpush.msra.mxu0 %v124
    %188 = vmatpush.msra.mxu0 %v123
    %189 = vmatpush.msra.mxu0 %v122
    %190 = vmatpush.msra.mxu0 %v121
    %191 = vmatpush.msra.mxu0 %v120
    %192 = vmatpush.msra.mxu0 %v119
    %193 = vmatpush.msra.mxu0 %v118
    %194 = vmatpush.msra.mxu0 %v117
    %195 = vmatpush.msra.mxu0 %v116
    %196 = vmatpush.msra.mxu0 %v115
    %197 = vmatpush.msra.mxu0 %v114
    %198 = vmatpush.msra.mxu0 %v113
    %199 = vmatpush.msra.mxu0 %v112
    %200 = vmatpush.msra.mxu0 %v111
    %201 = vmatpush.msra.mxu0 %v110
    %202 = vmatpush.msra.mxu0 %v109
    %203 = vmatmul.f32.gmra.mxu0 %v166
    %v204 = vpop.f32.mrf.mxu0
    %v205 = vadd.f32 %v185, %v204
    %206 = vdwg.mxu0
    %v208 = vperm.slane %v141, 0
    %v210 = vadd.f32 %v205, %v208
    %v211 = vtanh.pop %v210
    %212 = vst [vmem:[#allocation12] sm:$0x3] %v211
    %s213 = scalar_lea.vmem [#allocation4], 2
    %v214 = vld [vmem:[%s213] sm:$0x3]
    %215 = vmatpush.msra.mxu0 %v108
    %216 = vmatpush.msra.mxu0 %v107
    %217 = vmatpush.msra.mxu0 %v106
    %218 = vmatpush.msra.mxu0 %v105
    %219 = vmatpush.msra.mxu0 %v104
    %220 = vmatpush.msra.mxu0 %v103
    %221 = vmatpush.msra.mxu0 %v102
    %222 = vmatpush.msra.mxu0 %v101
    %223 = vmatpush.msra.mxu0 %v100
    %224 = vmatpush.msra.mxu0 %v99
    %225 = vmatpush.msra.mxu0 %v98
    %226 = vmatpush.msra.mxu0 %v97
    %227 = vmatpush.msra.mxu0 %v96
    %228 = vmatpush.msra.mxu0 %v95
    %229 = vmatpush.msra.mxu0 %v94
    %230 = vmatpush.msra.mxu0 %v93
    %231 = vmatmul.f32.gmra.mxu0 %v166
    %v232 = vpop.f32.mrf.mxu0
    %v233 = vadd.f32 0.0, %v232
    %234 = vdwg.mxu0
    %v235 = vadd.f32 %v214, %v233
    %v236 = vtanh.pop %v235
    %237 = vmatpush.msra.mxu0 %v140
    %238 = vmatpush.msra.mxu0 %v139
    %239 = vmatpush.msra.mxu0 %v138
    %240 = vmatpush.msra.mxu0 %v137
    %241 = vmatpush.msra.mxu0 %v136
    %242 = vmatpush.msra.mxu0 %v135
    %243 = vmatpush.msra.mxu0 %v134
    %244 = vmatpush.msra.mxu0 %v133
    %245 = vmatpush.msra.mxu0 %v132
    %246 = vmatpush.msra.mxu0 %v131
    %247 = vmatpush.msra.mxu0 %v130
    %248 = vmatpush.msra.mxu0 %v129
    %249 = vmatpush.msra.mxu0 %v128
    %250 = vmatpush.msra.mxu0 %v127
    %251 = vmatpush.msra.mxu0 %v126
    %252 = vmatpush.msra.mxu0 %v125
    %253 = vmatmul.f32.gmra.mxu0 %v211
    %v254 = vpop.f32.mrf.mxu0
    %v255 = vadd.f32 0.0, %v254
    %256 = vdwg.mxu0
    %257 = vmatpush.msra.mxu0 %v124
    %258 = vmatpush.msra.mxu0 %v123
    %259 = vmatpush.msra.mxu0 %v122
    %260 = vmatpush.msra.mxu0 %v121
    %261 = vmatpush.msra.mxu0 %v120
    %262 = vmatpush.msra.mxu0 %v119
    %263 = vmatpush.msra.mxu0 %v118
    %264 = vmatpush.msra.mxu0 %v117
    %265 = vmatpush.msra.mxu0 %v116
    %266 = vmatpush.msra.mxu0 %v115
    %267 = vmatpush.msra.mxu0 %v114
    %268 = vmatpush.msra.mxu0 %v113
    %269 = vmatpush.msra.mxu0 %v112
    %270 = vmatpush.msra.mxu0 %v111
    %271 = vmatpush.msra.mxu0 %v110
    %272 = vmatpush.msra.mxu0 %v109
    %273 = vmatmul.f32.gmra.mxu0 %v236
    %v274 = vpop.f32.mrf.mxu0
    %v275 = vadd.f32 %v255, %v274
    %276 = vdwg.mxu0
    %v277 = vadd.f32 %v275, %v208
    %v278 = vtanh.pop %v277
    %s279 = scalar_lea.vmem [#allocation12], 2
    %280 = vst [vmem:[%s279] sm:$0x3] %v278
    %s281 = scalar_lea.vmem [#allocation4], 4
    %v282 = vld [vmem:[%s281] sm:$0x3]
    %283 = vmatpush.msra.mxu0 %v108
    %284 = vmatpush.msra.mxu0 %v107
    %285 = vmatpush.msra.mxu0 %v106
    %286 = vmatpush.msra.mxu0 %v105
    %287 = vmatpush.msra.mxu0 %v104
    %288 = vmatpush.msra.mxu0 %v103
    %289 = vmatpush.msra.mxu0 %v102
    %290 = vmatpush.msra.mxu0 %v101
    %291 = vmatpush.msra.mxu0 %v100
    %292 = vmatpush.msra.mxu0 %v99
    %293 = vmatpush.msra.mxu0 %v98
    %294 = vmatpush.msra.mxu0 %v97
    %295 = vmatpush.msra.mxu0 %v96
    %296 = vmatpush.msra.mxu0 %v95
    %297 = vmatpush.msra.mxu0 %v94
    %298 = vmatpush.msra.mxu0 %v93
    %299 = vmatmul.f32.gmra.mxu0 %v236
    %v300 = vpop.f32.mrf.mxu0
    %v301 = vadd.f32 0.0, %v300
    %302 = vdwg.mxu0
    %v303 = vadd.f32 %v282, %v301
    %v304 = vtanh.pop %v303
    %305 = vmatpush.msra.mxu0 %v140
    %306 = vmatpush.msra.mxu0 %v139
    %307 = vmatpush.msra.mxu0 %v138
    %308 = vmatpush.msra.mxu0 %v137
    %309 = vmatpush.msra.mxu0 %v136
    %310 = vmatpush.msra.mxu0 %v135
    %311 = vmatpush.msra.mxu0 %v134
    %312 = vmatpush.msra.mxu0 %v133
    %313 = vmatpush.msra.mxu0 %v132
    %314 = vmatpush.msra.mxu0 %v131
    %315 = vmatpush.msra.mxu0 %v130
    %316 = vmatpush.msra.mxu0 %v129
    %317 = vmatpush.msra.mxu0 %v128
    %318 = vmatpush.msra.mxu0 %v127
    %319 = vmatpush.msra.mxu0 %v126
    %320 = vmatpush.msra.mxu0 %v125
    %321 = vmatmul.f32.gmra.mxu0 %v278
    %v322 = vpop.f32.mrf.mxu0
    %v323 = vadd.f32 0.0, %v322
    %324 = vdwg.mxu0
    %325 = vmatpush.msra.mxu0 %v124
    %326 = vmatpush.msra.mxu0 %v123
    %327 = vmatpush.msra.mxu0 %v122
    %328 = vmatpush.msra.mxu0 %v121
    %329 = vmatpush.msra.mxu0 %v120
    %330 = vmatpush.msra.mxu0 %v119
    %331 = vmatpush.msra.mxu0 %v118
    %332 = vmatpush.msra.mxu0 %v117
    %333 = vmatpush.msra.mxu0 %v116
    %334 = vmatpush.msra.mxu0 %v115
    %335 = vmatpush.msra.mxu0 %v114
    %336 = vmatpush.msra.mxu0 %v113
    %337 = vmatpush.msra.mxu0 %v112
    %338 = vmatpush.msra.mxu0 %v111
    %339 = vmatpush.msra.mxu0 %v110
    %340 = vmatpush.msra.mxu0 %v109
    %341 = vmatmul.f32.gmra.mxu0 %v304
    %v342 = vpop.f32.mrf.mxu0
    %v343 = vadd.f32 %v323, %v342
    %344 = vdwg.mxu0
    %v345 = vadd.f32 %v343, %v208
    %v346 = vtanh.pop %v345
    %s347 = scalar_lea.vmem [#allocation12], 4
    %348 = vst [vmem:[%s347] sm:$0x3] %v346
    %s349 = scalar_lea.vmem [#allocation4], 6
    %v350 = vld [vmem:[%s349] sm:$0x3]
    %351 = vmatpush.msra.mxu0 %v108
    %352 = vmatpush.msra.mxu0 %v107
    %353 = vmatpush.msra.mxu0 %v106
    %354 = vmatpush.msra.mxu0 %v105
    %355 = vmatpush.msra.mxu0 %v104
    %356 = vmatpush.msra.mxu0 %v103
    %357 = vmatpush.msra.mxu0 %v102
    %358 = vmatpush.msra.mxu0 %v101
    %359 = vmatpush.msra.mxu0 %v100
    %360 = vmatpush.msra.mxu0 %v99
    %361 = vmatpush.msra.mxu0 %v98
    %362 = vmatpush.msra.mxu0 %v97
    %363 = vmatpush.msra.mxu0 %v96
    %364 = vmatpush.msra.mxu0 %v95
    %365 = vmatpush.msra.mxu0 %v94
    %366 = vmatpush.msra.mxu0 %v93
    %367 = vmatmul.f32.gmra.mxu0 %v304
    %v368 = vpop.f32.mrf.mxu0
    %v369 = vadd.f32 0.0, %v368
    %370 = vdwg.mxu0
    %v371 = vadd.f32 %v350, %v369
    %v372 = vtanh.pop %v371
    %373 = vmatpush.msra.mxu0 %v140
    %374 = vmatpush.msra.mxu0 %v139
    %375 = vmatpush.msra.mxu0 %v138
    %376 = vmatpush.msra.mxu0 %v137
    %377 = vmatpush.msra.mxu0 %v136
    %378 = vmatpush.msra.mxu0 %v135
    %379 = vmatpush.msra.mxu0 %v134
    %380 = vmatpush.msra.mxu0 %v133
    %381 = vmatpush.msra.mxu0 %v132
    %382 = vmatpush.msra.mxu0 %v131
    %383 = vmatpush.msra.mxu0 %v130
    %384 = vmatpush.msra.mxu0 %v129
    %385 = vmatpush.msra.mxu0 %v128
    %386 = vmatpush.msra.mxu0 %v127
    %387 = vmatpush.msra.mxu0 %v126
    %388 = vmatpush.msra.mxu0 %v125
    %389 = vmatmul.f32.gmra.mxu0 %v346
    %v390 = vpop.f32.mrf.mxu0
    %v391 = vadd.f32 0.0, %v390
    %392 = vdwg.mxu0
    %393 = vmatpush.msra.mxu0 %v124
    %394 = vmatpush.msra.mxu0 %v123
    %395 = vmatpush.msra.mxu0 %v122
    %396 = vmatpush.msra.mxu0 %v121
    %397 = vmatpush.msra.mxu0 %v120
    %398 = vmatpush.msra.mxu0 %v119
    %399 = vmatpush.msra.mxu0 %v118
    %400 = vmatpush.msra.mxu0 %v117
    %401 = vmatpush.msra.mxu0 %v116
    %402 = vmatpush.msra.mxu0 %v115
    %403 = vmatpush.msra.mxu0 %v114
    %404 = vmatpush.msra.mxu0 %v113
    %405 = vmatpush.msra.mxu0 %v112
    %406 = vmatpush.msra.mxu0 %v111
    %407 = vmatpush.msra.mxu0 %v110
    %408 = vmatpush.msra.mxu0 %v109
    %409 = vmatmul.f32.gmra.mxu0 %v372
    %v410 = vpop.f32.mrf.mxu0
    %v411 = vadd.f32 %v391, %v410
    %412 = vdwg.mxu0
    %v413 = vadd.f32 %v411, %v208
    %v414 = vtanh.pop %v413
    %s415 = scalar_lea.vmem [#allocation12], 6
    %416 = vst [vmem:[%s415] sm:$0x3] %v414
    %s417 = scalar_lea.vmem [#allocation4], 8
    %v418 = vld [vmem:[%s417] sm:$0x3]
    %419 = vmatpush.msra.mxu0 %v108
    %420 = vmatpush.msra.mxu0 %v107
    %421 = vmatpush.msra.mxu0 %v106
    %422 = vmatpush.msra.mxu0 %v105
    %423 = vmatpush.msra.mxu0 %v104
    %424 = vmatpush.msra.mxu0 %v103
    %425 = vmatpush.msra.mxu0 %v102
    %426 = vmatpush.msra.mxu0 %v101
    %427 = vmatpush.msra.mxu0 %v100
    %428 = vmatpush.msra.mxu0 %v99
    %429 = vmatpush.msra.mxu0 %v98
    %430 = vmatpush.msra.mxu0 %v97
    %431 = vmatpush.msra.mxu0 %v96
    %432 = vmatpush.msra.mxu0 %v95
    %433 = vmatpush.msra.mxu0 %v94
    %434 = vmatpush.msra.mxu0 %v93
    %435 = vmatmul.f32.gmra.mxu0 %v372
    %v436 = vpop.f32.mrf.mxu0
    %v437 = vadd.f32 0.0, %v436
    %438 = vdwg.mxu0
    %v439 = vadd.f32 %v418, %v437
    %v440 = vtanh.pop %v439
    %441 = vmatpush.msra.mxu0 %v140
    %442 = vmatpush.msra.mxu0 %v139
    %443 = vmatpush.msra.mxu0 %v138
    %444 = vmatpush.msra.mxu0 %v137
    %445 = vmatpush.msra.mxu0 %v136
    %446 = vmatpush.msra.mxu0 %v135
    %447 = vmatpush.msra.mxu0 %v134
    %448 = vmatpush.msra.mxu0 %v133
    %449 = vmatpush.msra.mxu0 %v132
    %450 = vmatpush.msra.mxu0 %v131
    %451 = vmatpush.msra.mxu0 %v130
    %452 = vmatpush.msra.mxu0 %v129
    %453 = vmatpush.msra.mxu0 %v128
    %454 = vmatpush.msra.mxu0 %v127
    %455 = vmatpush.msra.mxu0 %v126
    %456 = vmatpush.msra.mxu0 %v125
    %457 = vmatmul.f32.gmra.mxu0 %v414
    %v458 = vpop.f32.mrf.mxu0
    %v459 = vadd.f32 0.0, %v458
    %460 = vdwg.mxu0
    %461 = vmatpush.msra.mxu0 %v124
    %462 = vmatpush.msra.mxu0 %v123
    %463 = vmatpush.msra.mxu0 %v122
    %464 = vmatpush.msra.mxu0 %v121
    %465 = vmatpush.msra.mxu0 %v120
    %466 = vmatpush.msra.mxu0 %v119
    %467 = vmatpush.msra.mxu0 %v118
    %468 = vmatpush.msra.mxu0 %v117
    %469 = vmatpush.msra.mxu0 %v116
    %470 = vmatpush.msra.mxu0 %v115
    %471 = vmatpush.msra.mxu0 %v114
    %472 = vmatpush.msra.mxu0 %v113
    %473 = vmatpush.msra.mxu0 %v112
    %474 = vmatpush.msra.mxu0 %v111
    %475 = vmatpush.msra.mxu0 %v110
    %476 = vmatpush.msra.mxu0 %v109
    %477 = vmatmul.f32.gmra.mxu0 %v440
    %v478 = vpop.f32.mrf.mxu0
    %v479 = vadd.f32 %v459, %v478
    %480 = vdwg.mxu0
    %v481 = vadd.f32 %v479, %v208
    %v482 = vtanh.pop %v481
    %s483 = scalar_lea.vmem [#allocation12], 8
    %484 = vst [vmem:[%s483] sm:$0x3] %v482
    %s485 = scalar_lea.vmem [#allocation4], 10
    %v486 = vld [vmem:[%s485] sm:$0x3]
    %487 = vmatpush.msra.mxu0 %v108
    %488 = vmatpush.msra.mxu0 %v107
    %489 = vmatpush.msra.mxu0 %v106
    %490 = vmatpush.msra.mxu0 %v105
    %491 = vmatpush.msra.mxu0 %v104
    %492 = vmatpush.msra.mxu0 %v103
    %493 = vmatpush.msra.mxu0 %v102
    %494 = vmatpush.msra.mxu0 %v101
    %495 = vmatpush.msra.mxu0 %v100
    %496 = vmatpush.msra.mxu0 %v99
    %497 = vmatpush.msra.mxu0 %v98
    %498 = vmatpush.msra.mxu0 %v97
    %499 = vmatpush.msra.mxu0 %v96
    %500 = vmatpush.msra.mxu0 %v95
    %501 = vmatpush.msra.mxu0 %v94
    %502 = vmatpush.msra.mxu0 %v93
    %503 = vmatmul.f32.gmra.mxu0 %v440
    %v504 = vpop.f32.mrf.mxu0
    %v505 = vadd.f32 0.0, %v504
    %506 = vdwg.mxu0
    %v507 = vadd.f32 %v486, %v505
    %v508 = vtanh.pop %v507
    %509 = vmatpush.msra.mxu0 %v140
    %510 = vmatpush.msra.mxu0 %v139
    %511 = vmatpush.msra.mxu0 %v138
    %512 = vmatpush.msra.mxu0 %v137
    %513 = vmatpush.msra.mxu0 %v136
    %514 = vmatpush.msra.mxu0 %v135
    %515 = vmatpush.msra.mxu0 %v134
    %516 = vmatpush.msra.mxu0 %v133
    %517 = vmatpush.msra.mxu0 %v132
    %518 = vmatpush.msra.mxu0 %v131
    %519 = vmatpush.msra.mxu0 %v130
    %520 = vmatpush.msra.mxu0 %v129
    %521 = vmatpush.msra.mxu0 %v128
    %522 = vmatpush.msra.mxu0 %v127
    %523 = vmatpush.msra.mxu0 %v126
    %524 = vmatpush.msra.mxu0 %v125
    %525 = vmatmul.f32.gmra.mxu0 %v482
    %v526 = vpop.f32.mrf.mxu0
    %v527 = vadd.f32 0.0, %v526
    %528 = vdwg.mxu0
    %529 = vmatpush.msra.mxu0 %v124
    %530 = vmatpush.msra.mxu0 %v123
    %531 = vmatpush.msra.mxu0 %v122
    %532 = vmatpush.msra.mxu0 %v121
    %533 = vmatpush.msra.mxu0 %v120
    %534 = vmatpush.msra.mxu0 %v119
    %535 = vmatpush.msra.mxu0 %v118
    %536 = vmatpush.msra.mxu0 %v117
    %537 = vmatpush.msra.mxu0 %v116
    %538 = vmatpush.msra.mxu0 %v115
    %539 = vmatpush.msra.mxu0 %v114
    %540 = vmatpush.msra.mxu0 %v113
    %541 = vmatpush.msra.mxu0 %v112
    %542 = vmatpush.msra.mxu0 %v111
    %543 = vmatpush.msra.mxu0 %v110
    %544 = vmatpush.msra.mxu0 %v109
    %545 = vmatmul.f32.gmra.mxu0 %v508
    %v546 = vpop.f32.mrf.mxu0
    %v547 = vadd.f32 %v527, %v546
    %548 = vdwg.mxu0
    %v549 = vadd.f32 %v547, %v208
    %v550 = vtanh.pop %v549
    %s551 = scalar_lea.vmem [#allocation12], 10
    %552 = vst [vmem:[%s551] sm:$0x3] %v550
    %s553 = scalar_lea.vmem [#allocation4], 12
    %v554 = vld [vmem:[%s553] sm:$0x3]
    %555 = vmatpush.msra.mxu0 %v108
    %556 = vmatpush.msra.mxu0 %v107
    %557 = vmatpush.msra.mxu0 %v106
    %558 = vmatpush.msra.mxu0 %v105
    %559 = vmatpush.msra.mxu0 %v104
    %560 = vmatpush.msra.mxu0 %v103
    %561 = vmatpush.msra.mxu0 %v102
    %562 = vmatpush.msra.mxu0 %v101
    %563 = vmatpush.msra.mxu0 %v100
    %564 = vmatpush.msra.mxu0 %v99
    %565 = vmatpush.msra.mxu0 %v98
    %566 = vmatpush.msra.mxu0 %v97
    %567 = vmatpush.msra.mxu0 %v96
    %568 = vmatpush.msra.mxu0 %v95
    %569 = vmatpush.msra.mxu0 %v94
    %570 = vmatpush.msra.mxu0 %v93
    %571 = vmatmul.f32.gmra.mxu0 %v508
    %v572 = vpop.f32.mrf.mxu0
    %v573 = vadd.f32 0.0, %v572
    %574 = vdwg.mxu0
    %v575 = vadd.f32 %v554, %v573
    %v576 = vtanh.pop %v575
    %577 = vmatpush.msra.mxu0 %v140
    %578 = vmatpush.msra.mxu0 %v139
    %579 = vmatpush.msra.mxu0 %v138
    %580 = vmatpush.msra.mxu0 %v137
    %581 = vmatpush.msra.mxu0 %v136
    %582 = vmatpush.msra.mxu0 %v135
    %583 = vmatpush.msra.mxu0 %v134
    %584 = vmatpush.msra.mxu0 %v133
    %585 = vmatpush.msra.mxu0 %v132
    %586 = vmatpush.msra.mxu0 %v131
    %587 = vmatpush.msra.mxu0 %v130
    %588 = vmatpush.msra.mxu0 %v129
    %589 = vmatpush.msra.mxu0 %v128
    %590 = vmatpush.msra.mxu0 %v127
    %591 = vmatpush.msra.mxu0 %v126
    %592 = vmatpush.msra.mxu0 %v125
    %593 = vmatmul.f32.gmra.mxu0 %v550
    %v594 = vpop.f32.mrf.mxu0
    %v595 = vadd.f32 0.0, %v594
    %596 = vdwg.mxu0
    %597 = vmatpush.msra.mxu0 %v124
    %598 = vmatpush.msra.mxu0 %v123
    %599 = vmatpush.msra.mxu0 %v122
    %600 = vmatpush.msra.mxu0 %v121
    %601 = vmatpush.msra.mxu0 %v120
    %602 = vmatpush.msra.mxu0 %v119
    %603 = vmatpush.msra.mxu0 %v118
    %604 = vmatpush.msra.mxu0 %v117
    %605 = vmatpush.msra.mxu0 %v116
    %606 = vmatpush.msra.mxu0 %v115
    %607 = vmatpush.msra.mxu0 %v114
    %608 = vmatpush.msra.mxu0 %v113
    %609 = vmatpush.msra.mxu0 %v112
    %610 = vmatpush.msra.mxu0 %v111
    %611 = vmatpush.msra.mxu0 %v110
    %612 = vmatpush.msra.mxu0 %v109
    %613 = vmatmul.f32.gmra.mxu0 %v576
    %v614 = vpop.f32.mrf.mxu0
    %v615 = vadd.f32 %v595, %v614
    %616 = vdwg.mxu0
    %v617 = vadd.f32 %v615, %v208
    %v618 = vtanh.pop %v617
    %s619 = scalar_lea.vmem [#allocation12], 12
    %620 = vst [vmem:[%s619] sm:$0x3] %v618
    %s621 = scalar_lea.vmem [#allocation4], 14
    %v622 = vld [vmem:[%s621] sm:$0x3]
    %623 = vmatpush.msra.mxu0 %v108
    %624 = vmatpush.msra.mxu0 %v107
    %625 = vmatpush.msra.mxu0 %v106
    %626 = vmatpush.msra.mxu0 %v105
    %627 = vmatpush.msra.mxu0 %v104
    %628 = vmatpush.msra.mxu0 %v103
    %629 = vmatpush.msra.mxu0 %v102
    %630 = vmatpush.msra.mxu0 %v101
    %631 = vmatpush.msra.mxu0 %v100
    %632 = vmatpush.msra.mxu0 %v99
    %633 = vmatpush.msra.mxu0 %v98
    %634 = vmatpush.msra.mxu0 %v97
    %635 = vmatpush.msra.mxu0 %v96
    %636 = vmatpush.msra.mxu0 %v95
    %637 = vmatpush.msra.mxu0 %v94
    %638 = vmatpush.msra.mxu0 %v93
    %639 = vmatmul.f32.gmra.mxu0 %v576
    %v640 = vpop.f32.mrf.mxu0
    %v641 = vadd.f32 0.0, %v640
    %642 = vdwg.mxu0
    %v643 = vadd.f32 %v622, %v641
    %v644 = vtanh.pop %v643
    %645 = vmatpush.msra.mxu0 %v140
    %646 = vmatpush.msra.mxu0 %v139
    %647 = vmatpush.msra.mxu0 %v138
    %648 = vmatpush.msra.mxu0 %v137
    %649 = vmatpush.msra.mxu0 %v136
    %650 = vmatpush.msra.mxu0 %v135
    %651 = vmatpush.msra.mxu0 %v134
    %652 = vmatpush.msra.mxu0 %v133
    %653 = vmatpush.msra.mxu0 %v132
    %654 = vmatpush.msra.mxu0 %v131
    %655 = vmatpush.msra.mxu0 %v130
    %656 = vmatpush.msra.mxu0 %v129
    %657 = vmatpush.msra.mxu0 %v128
    %658 = vmatpush.msra.mxu0 %v127
    %659 = vmatpush.msra.mxu0 %v126
    %660 = vmatpush.msra.mxu0 %v125
    %661 = vmatmul.f32.gmra.mxu0 %v618
    %v662 = vpop.f32.mrf.mxu0
    %v663 = vadd.f32 0.0, %v662
    %664 = vdwg.mxu0
    %665 = vmatpush.msra.mxu0 %v124
    %666 = vmatpush.msra.mxu0 %v123
    %667 = vmatpush.msra.mxu0 %v122
    %668 = vmatpush.msra.mxu0 %v121
    %669 = vmatpush.msra.mxu0 %v120
    %670 = vmatpush.msra.mxu0 %v119
    %671 = vmatpush.msra.mxu0 %v118
    %672 = vmatpush.msra.mxu0 %v117
    %673 = vmatpush.msra.mxu0 %v116
    %674 = vmatpush.msra.mxu0 %v115
    %675 = vmatpush.msra.mxu0 %v114
    %676 = vmatpush.msra.mxu0 %v113
    %677 = vmatpush.msra.mxu0 %v112
    %678 = vmatpush.msra.mxu0 %v111
    %679 = vmatpush.msra.mxu0 %v110
    %680 = vmatpush.msra.mxu0 %v109
    %681 = vmatmul.f32.gmra.mxu0 %v644
    %v682 = vpop.f32.mrf.mxu0
    %v683 = vadd.f32 %v663, %v682
    %684 = vdwg.mxu0
    %v685 = vadd.f32 %v683, %v208
    %v686 = vtanh.pop %v685
    %s687 = scalar_lea.vmem [#allocation12], 14
    %688 = vst [vmem:[%s687] sm:$0x3] %v686
    %689 = vst [vmem:[#allocation2] sm:$0x3] %v644
    %690 = vst [vmem:[#allocation3] sm:$0x3] %v686
    // Predicated region
    $region42: #{tpu_custom_call.1} parent=1 // pred_check
      %p691 = pneg %p87
    $region43: #{tpu_custom_call.1} parent=1 // pred_check_branch
      %693 = sbr.rel (%p691) target = $region45
    $region44: #{tpu_custom_call.1} parent=1 // pred_region
      %694 = vst [vmem:[#allocation13] sm:$0x3] %v644
      %s695 = scalar_lea.vmem [#allocation13], 2
      %696 = vst [vmem:[%s695] sm:$0x3] %v686
    $region45: #{tpu_custom_call.1} parent=1 // pred_fallthru
      _
    // Predicated region
    $region46: #{tpu_custom_call.1} parent=1 // pred_check
      _
    $region47: #{tpu_custom_call.1} parent=1 // pred_check_branch
      %698 = sbr.rel (0) target = $region49
    $region48: #{tpu_custom_call.1} parent=1 // pred_region
      %700 = vsyncadd [#allocation6], 0
      %s701 = sshll.u32 [#allocation12], 4
      %s702 = int_to_ptr.vmem [resolvable:$true] %s701
      %s703 = sshll.u32 %s5, 4
      %s704 = int_to_ptr.hbm [resolvable:$true] %s703
      %709 = dma.vmem_to_hbm [thread:$0]  %s702, 256, %s704, [#allocation6], 32, 32, 2
    $region49: #{tpu_custom_call.1} parent=1 // pred_fallthru
      _
    // Predicated region
    $region50: #{tpu_custom_call.1} parent=1 // pred_check
      _
    $region51: #{tpu_custom_call.1} parent=1 // pred_check_branch
      %711 = sbr.rel (0) target = $region53
    $region52: #{tpu_custom_call.1} parent=1 // pred_region
      %713 = vsyncadd [#allocation14], 0
      %s714 = sshll.u32 [#allocation13], 4
      %s715 = int_to_ptr.vmem [resolvable:$true] %s714
      %s716 = sshll.u32 %s6, 4
      %s717 = int_to_ptr.hbm [resolvable:$true] %s716
      %722 = dma.vmem_to_hbm [thread:$0]  %s715, 64, %s717, [#allocation14], 32, 32, 2
    $region53: #{tpu_custom_call.1} parent=1 // pred_fallthru
      _
    // Predicated region
    $region54: #{tpu_custom_call.1} parent=1 // pred_check
      _
    $region55: #{tpu_custom_call.1} parent=1 // pred_check_branch
      %724 = sbr.rel (0) target = $region57
    $region56: #{tpu_custom_call.1} parent=1 // pred_region
      %726 = dma.done [#allocation6], 256
    $region57: #{tpu_custom_call.1} parent=1 // pred_fallthru
      _
    // Predicated region
    $region58: #{tpu_custom_call.1} parent=1 // pred_check
      _
    $region59: #{tpu_custom_call.1} parent=1 // pred_check_branch
      %728 = sbr.rel (0) target = $region61
    $region60: #{tpu_custom_call.1} parent=1 // pred_region
      %730 = dma.done [#allocation14], 64
    $region61: #{tpu_custom_call.1} parent=1 // pred_fallthru
      _
    %731 = vsyncpa [#allocation5], 1
    %732 = vsyncpa [#allocation8], 1
    %733 = vsyncpa [#allocation11], 1
    %734 = vsyncpa [#allocation6], 1
    %735 = vsyncpa [#allocation14], 1

</llo_original>
